<compile_context>
chip_gen: v7x
topology: tpu7x:2x2x1
jax: 0.10.0
libtpu: 0.0.40
codegen_flags: <defaults>
</compile_context>

<pallas_src>
import numpy as np
import jax
import jax.numpy as jnp
from jax import lax
from jax.experimental import pallas as pl
from jax.experimental.pallas import tpu as pltpu


def _round_up(n, m):
    return ((n + m - 1) // m) * m


def _cdiv(a, b):
    return -(-a // b)


# ----------------------------------------------------------------------------
# Kernel
# ----------------------------------------------------------------------------
def cos_mlp_kernel(x_ref, pt_ref, w1x_ref, w1s_ref, b1_ref,
                   w2_ref, b2_ref, w3_ref, b3_ref, o_ref):
    eps = 1e-8
    x = x_ref[...]                                   # [TB, 2]  f32
    x0 = x[:, 0:1]
    x1 = x[:, 1:2]

    # 1 / max(||x||, eps) via EUP rsqrt (sqrt is monotone, so max commutes).
    inv_xn = lax.rsqrt(jnp.maximum(x0 * x0 + x1 * x1, eps * eps))   # [TB, 1]
    xh0 = x0 * inv_xn
    xh1 = x1 * inv_xn

    # Cosine sims vs pre-normalized prototypes. K=2 contraction as two broadcast
    # FMAs on the VPU (an MXU matmul would pad K toward 128 for no useful work).
    # Matches per-factor clamp max(||x||,eps)*max(||p||,eps); identical to the
    # PyTorch product clamp for non-degenerate inputs.
    pt = pt_ref[...]                                 # [2, CP] f32 (padded cols 0)
    sims = xh0 * pt[0:1, :] + xh1 * pt[1:2, :]       # [TB, CP] f32

    # Layer 1: x-part (K=2) as VPU FMAs in f32, sims-part (K=CP) on the MXU in
    # bf16 with f32 accumulation.
    w1x = w1x_ref[...]                               # [2, HP] f32
    h1 = (x0 * w1x[0:1, :] + x1 * w1x[1:2, :]
          + jnp.dot(sims.astype(jnp.bfloat16), w1s_ref[...],
                    preferred_element_type=jnp.float32)
          + b1_ref[...])
    h1 = jnp.maximum(h1, 0.0)                        # ReLU (f32)

    h2 = jnp.dot(h1.astype(jnp.bfloat16), w2_ref[...],
                 preferred_element_type=jnp.float32) + b2_ref[...]
    h2 = jnp.maximum(h2, 0.0)                        # ReLU (f32)

    logits = jnp.dot(h2.astype(jnp.bfloat16), w3_ref[...],
                     preferred_element_type=jnp.float32) + b3_ref[...]

    # Single-EUP-op sigmoid: sigmoid(z) = 0.5*tanh(0.5*z) + 0.5 (no overflow).
    o_ref[...] = (0.5 * jnp.tanh(0.5 * logits) + 0.5).astype(o_ref.dtype)


# ----------------------------------------------------------------------------
# One-time parameter preparation (hoisted out of the per-call path)
# ----------------------------------------------------------------------------
def prepare_cos_mlp_params(prototypes, params):
    """Pads / splits / casts parameters once. Returns a dict of device arrays."""
    eps = 1e-8
    f32 = jnp.float32
    bf16 = jnp.bfloat16

    C, F = prototypes.shape                       # F == 2
    w1, b1, w2, b2, w3, b3 = params
    H = w1.shape[1]

    CP = _round_up(C, 128)                        # lane-dense sims / output
    HP = _round_up(H, 128)                        # lane-dense hidden
    OP = CP                                       # padded output dim

    # Pre-normalize prototypes (batch-invariant); padded columns stay zero.
    p = prototypes.astype(f32)
    pn = jnp.sqrt(jnp.sum(p * p, axis=1, keepdims=True))            # [C, 1]
    pt_hat = (p / jnp.maximum(pn, eps)).T                           # [2, C]
    pt_hat = jnp.zeros((F, CP), f32).at[:, :C].set(pt_hat)

    # Split W1 into x-rows (K=2, stays f32 for the VPU FMA path) and sims-rows
    # (K=C, goes to the MXU in bf16). Everything zero-padded to lane-dense.
    w1 = w1.astype(f32); w2 = w2.astype(f32); w3 = w3.astype(f32)
    w1x = jnp.zeros((F, HP), f32).at[:, :H].set(w1[:F, :])
    w1s = jnp.zeros((CP, HP), f32).at[:C, :H].set(w1[F:, :]).astype(bf16)
    b1p = jnp.zeros((1, HP), f32).at[0, :H].set(b1.astype(f32))
    w2p = jnp.zeros((HP, HP), f32).at[:H, :H].set(w2).astype(bf16)
    b2p = jnp.zeros((1, HP), f32).at[0, :H].set(b2.astype(f32))
    w3p = jnp.zeros((HP, OP), f32).at[:H, :C].set(w3).astype(bf16)
    b3p = jnp.zeros((1, OP), f32).at[0, :C].set(b3.astype(f32))

    return dict(pt_hat=pt_hat, w1x=w1x, w1s=w1s, b1=b1p, w2=w2p, b2=b2p,
                w3=w3p, b3=b3p, C=C, H=H, F=F, CP=CP, HP=HP, OP=OP)


# ----------------------------------------------------------------------------
# Forward
# ----------------------------------------------------------------------------
_MIN_SPLIT_ROWS = 256   # don't force a 2-way grid split below this many rows


def cos_mlp_forward(x, prep, *, tile_b=4096):
    """x: [B, 2] float.  prep: output of prepare_cos_mlp_params().

    Returns sigmoid logits [B, C] in bfloat16 (cast as you like downstream).
    """
    f32 = jnp.float32
    bf16 = jnp.bfloat16
    B = x.shape[0]
    F, CP, HP, OP, C = prep["F"], prep["CP"], prep["HP"], prep["OP"], prep["C"]

    # Pick the number of grid steps first, then size the tile so batch padding
    # stays below one (8-row) row-group per step instead of up to TILE_B-1 rows.
    n_tiles = max(1, _cdiv(B, tile_b))
    if n_tiles == 1 and B >= 2 * _MIN_SPLIT_ROWS:
        n_tiles = 2                               # give both v7x TCs a step
    elif n_tiles > 1 and (n_tiles % 2):
        n_tiles += 1                              # even step count for 2 TCs
    TILE_B = _round_up(_cdiv(B, n_tiles), 8)
    B_pad = TILE_B * n_tiles

    x_p = jnp.zeros((B_pad, F), f32).at[:B].set(x.astype(f32))

    res = lambda i: (0, 0)                        # resident across grid steps

    out = pl.pallas_call(
        cos_mlp_kernel,
        out_shape=jax.ShapeDtypeStruct((B_pad, OP), bf16),
        grid_spec=pltpu.PrefetchScalarGridSpec(
            num_scalar_prefetch=0,
            grid=(n_tiles,),
            in_specs=[
                pl.BlockSpec((TILE_B, F), lambda i: (i, 0)),   # x (pipelined)
                pl.BlockSpec((F, CP), res),                    # pt_hat (f32)
                pl.BlockSpec((F, HP), res),                    # w1[:2]  (f32)
                pl.BlockSpec((CP, HP), res),                   # w1[2:]  (bf16)
                pl.BlockSpec((1, HP), res),                    # b1      (f32)
                pl.BlockSpec((HP, HP), res),                   # w2      (bf16)
                pl.BlockSpec((1, HP), res),                    # b2      (f32)
                pl.BlockSpec((HP, OP), res),                   # w3      (bf16)
                pl.BlockSpec((1, OP), res),                    # b3      (f32)
            ],
            out_specs=pl.BlockSpec((TILE_B, OP), lambda i: (i, 0)),
        ),
        compiler_params=pltpu.CompilerParams(
            dimension_semantics=("parallel",),
        ),
    )(x_p, prep["pt_hat"], prep["w1x"], prep["w1s"], prep["b1"],
      prep["w2"], prep["b2"], prep["w3"], prep["b3"])

    # Drop batch padding and the zero-padded (sigmoid == 0.5) logit columns.
    return out[:B, :C]


# ----------------------------------------------------------------------------
# Init / reference
# ----------------------------------------------------------------------------
def init_params(key, input_dim, hidden_dim, out_dim):
    """Deterministic init mimicking torch.nn.Linear default (U[-1/sqrt(fan_in), ..])."""
    ks = jax.random.split(key, 6)

    def lin(kw, kb, fan_in, fan_out):
        bound = 1.0 / np.sqrt(fan_in)
        w = jax.random.uniform(kw, (fan_in, fan_out), jnp.float32, -bound, bound)
        b = jax.random.uniform(kb, (fan_out,), jnp.float32, -bound, bound)
        return w, b

    w1, b1 = lin(ks[0], ks[1], input_dim, hidden_dim)
    w2, b2 = lin(ks[2], ks[3], hidden_dim, hidden_dim)
    w3, b3 = lin(ks[4], ks[5], hidden_dim, out_dim)
    return (w1, b1, w2, b2, w3, b3)


def reference_forward(x, prototypes, params):
    """Pure-JAX f32 reference mirroring the PyTorch module."""
    eps = 1e-8
    w1, b1, w2, b2, w3, b3 = params
    xn = jnp.linalg.norm(x, axis=1, keepdims=True)
    pn = jnp.linalg.norm(prototypes, axis=1, keepdims=True)
    sims = (x @ prototypes.T) / (jnp.maximum(xn, eps) * jnp.maximum(pn, eps).T)
    x_aug = jnp.concatenate([x, sims], axis=1)
    h1 = jax.nn.relu(x_aug @ w1 + b1)
    h2 = jax.nn.relu(h1 @ w2 + b2)
    return jax.nn.sigmoid(h2 @ w3 + b3)


if __name__ == "__main__":
    B = 8          # batch of 2-D points
    C = 4          # number of class prototypes
    H = 32         # hidden dim

    key = jax.random.PRNGKey(0)
    kx, kp, kparams = jax.random.split(key, 3)

    x = jax.random.normal(kx, (B, 2), jnp.float32)
    prototypes = jax.random.normal(kp, (C, 2), jnp.float32)
    params = init_params(kparams, input_dim=2 + C, hidden_dim=H, out_dim=C)

    prep = prepare_cos_mlp_params(prototypes, params)   # one-time prep (cacheable)
    out = jax.block_until_ready(cos_mlp_forward(x, prep))
    ref = reference_forward(x, prototypes, params)

    # Tolerance reflects bf16 MXU operands + bf16 output (f32 accumulation).
    np.testing.assert_allclose(np.asarray(out, dtype=np.float32),
                               np.asarray(ref), rtol=2e-2, atol=2e-2)

    print("KERNEL_OK")
</pallas_src>

<mosaic_0001>
module attributes {stable_mosaic.version = 11 : i64} {
  func.func @cos_mlp_kernel(%arg0: i32, %arg1: memref<8x2xf32, #tpu.memory_space<vmem>>, %arg2: memref<2x128xf32, #tpu.memory_space<vmem>>, %arg3: memref<2x128xf32, #tpu.memory_space<vmem>>, %arg4: memref<128x128xbf16, #tpu.memory_space<vmem>>, %arg5: memref<1x128xf32, #tpu.memory_space<vmem>>, %arg6: memref<128x128xbf16, #tpu.memory_space<vmem>>, %arg7: memref<1x128xf32, #tpu.memory_space<vmem>>, %arg8: memref<128x128xbf16, #tpu.memory_space<vmem>>, %arg9: memref<1x128xf32, #tpu.memory_space<vmem>>, %arg10: memref<8x128xbf16, #tpu.memory_space<vmem>>) attributes {dimension_semantics = [#tpu.dimension_semantics<parallel>], iteration_bounds = array<i64: 1>, scalar_prefetch = 0 : i64, scratch_operands = 0 : i64, tpu.core_type = #tpu.core_type<tc>, window_params = [{transform_indices = @transform_0, window_bounds = array<i64: 8, 2>}, {pipeline_mode = #tpu.pipeline_mode<synchronous>, transform_indices = @transform_1, window_bounds = array<i64: 2, 128>}, {pipeline_mode = #tpu.pipeline_mode<synchronous>, transform_indices = @transform_2, window_bounds = array<i64: 2, 128>}, {pipeline_mode = #tpu.pipeline_mode<synchronous>, transform_indices = @transform_3, window_bounds = array<i64: 128, 128>}, {pipeline_mode = #tpu.pipeline_mode<synchronous>, transform_indices = @transform_4, window_bounds = array<i64: 1, 128>}, {pipeline_mode = #tpu.pipeline_mode<synchronous>, transform_indices = @transform_5, window_bounds = array<i64: 128, 128>}, {pipeline_mode = #tpu.pipeline_mode<synchronous>, transform_indices = @transform_6, window_bounds = array<i64: 1, 128>}, {pipeline_mode = #tpu.pipeline_mode<synchronous>, transform_indices = @transform_7, window_bounds = array<i64: 128, 128>}, {pipeline_mode = #tpu.pipeline_mode<synchronous>, transform_indices = @transform_8, window_bounds = array<i64: 1, 128>}, {transform_indices = @transform_9, window_bounds = array<i64: 8, 128>}]} {
    %c0 = arith.constant 0 : index
    %c0_0 = arith.constant 0 : index
    %0 = vector.load %arg1[%c0, %c0_0] : memref<8x2xf32, #tpu.memory_space<vmem>>, vector<8x2xf32>
    %1 = vector.extract_strided_slice %0 {offsets = [0, 0], sizes = [8, 1], strides = [1, 1]} : vector<8x2xf32> to vector<8x1xf32>
    %2 = vector.extract_strided_slice %0 {offsets = [0, 1], sizes = [8, 1], strides = [1, 1]} : vector<8x2xf32> to vector<8x1xf32>
    %3 = arith.mulf %1, %1 : vector<8x1xf32>
    %4 = arith.mulf %2, %2 : vector<8x1xf32>
    %5 = arith.addf %3, %4 : vector<8x1xf32>
    %cst = arith.constant 1.000000e-16 : f32
    %6 = vector.broadcast %cst : f32 to vector<8x1xf32>
    %7 = arith.maximumf %5, %6 : vector<8x1xf32>
    %8 = math.rsqrt %7 : vector<8x1xf32>
    %9 = arith.mulf %1, %8 : vector<8x1xf32>
    %10 = arith.mulf %2, %8 : vector<8x1xf32>
    %c0_1 = arith.constant 0 : index
    %c0_2 = arith.constant 0 : index
    %11 = vector.load %arg2[%c0_1, %c0_2] : memref<2x128xf32, #tpu.memory_space<vmem>>, vector<2x128xf32>
    %12 = vector.extract_strided_slice %11 {offsets = [0, 0], sizes = [1, 128], strides = [1, 1]} : vector<2x128xf32> to vector<1x128xf32>
    %13 = vector.broadcast %9 : vector<8x1xf32> to vector<8x128xf32>
    %14 = vector.broadcast %12 : vector<1x128xf32> to vector<8x128xf32>
    %15 = arith.mulf %13, %14 : vector<8x128xf32>
    %16 = vector.extract_strided_slice %11 {offsets = [1, 0], sizes = [1, 128], strides = [1, 1]} : vector<2x128xf32> to vector<1x128xf32>
    %17 = vector.broadcast %10 : vector<8x1xf32> to vector<8x128xf32>
    %18 = vector.broadcast %16 : vector<1x128xf32> to vector<8x128xf32>
    %19 = arith.mulf %17, %18 : vector<8x128xf32>
    %20 = arith.addf %15, %19 : vector<8x128xf32>
    %c0_3 = arith.constant 0 : index
    %c0_4 = arith.constant 0 : index
    %21 = vector.load %arg3[%c0_3, %c0_4] : memref<2x128xf32, #tpu.memory_space<vmem>>, vector<2x128xf32>
    %22 = vector.extract_strided_slice %21 {offsets = [0, 0], sizes = [1, 128], strides = [1, 1]} : vector<2x128xf32> to vector<1x128xf32>
    %23 = vector.broadcast %1 : vector<8x1xf32> to vector<8x128xf32>
    %24 = vector.broadcast %22 : vector<1x128xf32> to vector<8x128xf32>
    %25 = arith.mulf %23, %24 : vector<8x128xf32>
    %26 = vector.extract_strided_slice %21 {offsets = [1, 0], sizes = [1, 128], strides = [1, 1]} : vector<2x128xf32> to vector<1x128xf32>
    %27 = vector.broadcast %2 : vector<8x1xf32> to vector<8x128xf32>
    %28 = vector.broadcast %26 : vector<1x128xf32> to vector<8x128xf32>
    %29 = arith.mulf %27, %28 : vector<8x128xf32>
    %30 = arith.addf %25, %29 : vector<8x128xf32>
    %31 = arith.truncf %20 : vector<8x128xf32> to vector<8x128xbf16>
    %c0_5 = arith.constant 0 : index
    %c0_6 = arith.constant 0 : index
    %32 = vector.load %arg4[%c0_5, %c0_6] : memref<128x128xbf16, #tpu.memory_space<vmem>>, vector<128x128xbf16>
    %cst_7 = arith.constant dense<0.000000e+00> : vector<8x128xf32>
    %33 = tpu.matmul %31, %32, %cst_7 {dimension_numbers = #tpu.dot_dimension_numbers<[1], [0], [0], [1], [0, 0, 1, 1], [], []>} : vector<8x128xbf16>, vector<128x128xbf16>, vector<8x128xf32> -> vector<8x128xf32>
    %34 = arith.addf %30, %33 : vector<8x128xf32>
    %c0_8 = arith.constant 0 : index
    %c0_9 = arith.constant 0 : index
    %35 = vector.load %arg5[%c0_8, %c0_9] : memref<1x128xf32, #tpu.memory_space<vmem>>, vector<1x128xf32>
    %36 = vector.broadcast %35 : vector<1x128xf32> to vector<8x128xf32>
    %37 = arith.addf %34, %36 : vector<8x128xf32>
    %cst_10 = arith.constant 0.000000e+00 : f32
    %38 = vector.broadcast %cst_10 : f32 to vector<8x128xf32>
    %39 = arith.maximumf %37, %38 : vector<8x128xf32>
    %40 = arith.truncf %39 : vector<8x128xf32> to vector<8x128xbf16>
    %c0_11 = arith.constant 0 : index
    %c0_12 = arith.constant 0 : index
    %41 = vector.load %arg6[%c0_11, %c0_12] : memref<128x128xbf16, #tpu.memory_space<vmem>>, vector<128x128xbf16>
    %cst_13 = arith.constant dense<0.000000e+00> : vector<8x128xf32>
    %42 = tpu.matmul %40, %41, %cst_13 {dimension_numbers = #tpu.dot_dimension_numbers<[1], [0], [0], [1], [0, 0, 1, 1], [], []>} : vector<8x128xbf16>, vector<128x128xbf16>, vector<8x128xf32> -> vector<8x128xf32>
    %c0_14 = arith.constant 0 : index
    %c0_15 = arith.constant 0 : index
    %43 = vector.load %arg7[%c0_14, %c0_15] : memref<1x128xf32, #tpu.memory_space<vmem>>, vector<1x128xf32>
    %44 = vector.broadcast %43 : vector<1x128xf32> to vector<8x128xf32>
    %45 = arith.addf %42, %44 : vector<8x128xf32>
    %cst_16 = arith.constant 0.000000e+00 : f32
    %46 = vector.broadcast %cst_16 : f32 to vector<8x128xf32>
    %47 = arith.maximumf %45, %46 : vector<8x128xf32>
    %48 = arith.truncf %47 : vector<8x128xf32> to vector<8x128xbf16>
    %c0_17 = arith.constant 0 : index
    %c0_18 = arith.constant 0 : index
    %49 = vector.load %arg8[%c0_17, %c0_18] : memref<128x128xbf16, #tpu.memory_space<vmem>>, vector<128x128xbf16>
    %cst_19 = arith.constant dense<0.000000e+00> : vector<8x128xf32>
    %50 = tpu.matmul %48, %49, %cst_19 {dimension_numbers = #tpu.dot_dimension_numbers<[1], [0], [0], [1], [0, 0, 1, 1], [], []>} : vector<8x128xbf16>, vector<128x128xbf16>, vector<8x128xf32> -> vector<8x128xf32>
    %c0_20 = arith.constant 0 : index
    %c0_21 = arith.constant 0 : index
    %51 = vector.load %arg9[%c0_20, %c0_21] : memref<1x128xf32, #tpu.memory_space<vmem>>, vector<1x128xf32>
    %52 = vector.broadcast %51 : vector<1x128xf32> to vector<8x128xf32>
    %53 = arith.addf %50, %52 : vector<8x128xf32>
    %cst_22 = arith.constant 5.000000e-01 : f32
    %54 = vector.broadcast %cst_22 : f32 to vector<8x128xf32>
    %55 = arith.mulf %54, %53 : vector<8x128xf32>
    %56 = math.tanh %55 : vector<8x128xf32>
    %cst_23 = arith.constant 5.000000e-01 : f32
    %57 = vector.broadcast %cst_23 : f32 to vector<8x128xf32>
    %58 = arith.mulf %57, %56 : vector<8x128xf32>
    %cst_24 = arith.constant 5.000000e-01 : f32
    %59 = vector.broadcast %cst_24 : f32 to vector<8x128xf32>
    %60 = arith.addf %58, %59 : vector<8x128xf32>
    %61 = arith.truncf %60 : vector<8x128xf32> to vector<8x128xbf16>
    %c0_25 = arith.constant 0 : index
    %c0_26 = arith.constant 0 : index
    %62 = vector.load %arg10[%c0_25, %c0_26] : memref<8x128xbf16, #tpu.memory_space<vmem>>, vector<8x128xbf16>
    tpu.vector_store %arg10[%c0_25, %c0_26], %61 {strides = array<i32>} : memref<8x128xbf16, #tpu.memory_space<vmem>>, vector<8x128xbf16>,
    return
  }
  func.func @transform_0(%arg0: i32) -> (i32, i32) {
    %c0_i32 = arith.constant 0 : i32
    %c0_i32_0 = arith.constant 0 : i32
    return %arg0, %c0_i32 : i32, i32
  }
  func.func @transform_1(%arg0: i32) -> (i32, i32) {
    %c0_i32 = arith.constant 0 : i32
    %c0_i32_0 = arith.constant 0 : i32
    %c0_i32_1 = arith.constant 0 : i32
    return %c0_i32, %c0_i32_0 : i32, i32
  }
  func.func @transform_2(%arg0: i32) -> (i32, i32) {
    %c0_i32 = arith.constant 0 : i32
    %c0_i32_0 = arith.constant 0 : i32
    %c0_i32_1 = arith.constant 0 : i32
    return %c0_i32, %c0_i32_0 : i32, i32
  }
  func.func @transform_3(%arg0: i32) -> (i32, i32) {
    %c0_i32 = arith.constant 0 : i32
    %c0_i32_0 = arith.constant 0 : i32
    %c0_i32_1 = arith.constant 0 : i32
    return %c0_i32, %c0_i32_0 : i32, i32
  }
  func.func @transform_4(%arg0: i32) -> (i32, i32) {
    %c0_i32 = arith.constant 0 : i32
    %c0_i32_0 = arith.constant 0 : i32
    %c0_i32_1 = arith.constant 0 : i32
    return %c0_i32, %c0_i32_0 : i32, i32
  }
  func.func @transform_5(%arg0: i32) -> (i32, i32) {
    %c0_i32 = arith.constant 0 : i32
    %c0_i32_0 = arith.constant 0 : i32
    %c0_i32_1 = arith.constant 0 : i32
    return %c0_i32, %c0_i32_0 : i32, i32
  }
  func.func @transform_6(%arg0: i32) -> (i32, i32) {
    %c0_i32 = arith.constant 0 : i32
    %c0_i32_0 = arith.constant 0 : i32
    %c0_i32_1 = arith.constant 0 : i32
    return %c0_i32, %c0_i32_0 : i32, i32
  }
  func.func @transform_7(%arg0: i32) -> (i32, i32) {
    %c0_i32 = arith.constant 0 : i32
    %c0_i32_0 = arith.constant 0 : i32
    %c0_i32_1 = arith.constant 0 : i32
    return %c0_i32, %c0_i32_0 : i32, i32
  }
  func.func @transform_8(%arg0: i32) -> (i32, i32) {
    %c0_i32 = arith.constant 0 : i32
    %c0_i32_0 = arith.constant 0 : i32
    %c0_i32_1 = arith.constant 0 : i32
    return %c0_i32, %c0_i32_0 : i32, i32
  }
  func.func @transform_9(%arg0: i32) -> (i32, i32) {
    %c0_i32 = arith.constant 0 : i32
    %c0_i32_0 = arith.constant 0 : i32
    return %arg0, %c0_i32 : i32, i32
  }
}

</mosaic_0001>

<llo_original>
// kernel: tpu_custom_call.1
$region0: #{tpu_custom_call.1}
  #allocation0 [shape = 'u32[]', space=smem, size = 0x4, offset = 0x4, fixed_abs, tag = 'smem constant byte address 0x4 - core index']
  #allocation1 [shape = 'u32[144,128]{1,0:T(1,128)}', space=vmem, size = 0x12000, scoped, tag = 'internal scratch']
  %s0 = inlined_call_operand.vmem [shape: f32[8,2], index: 0, kind: input, shape index: {}]
  %s1 = inlined_call_operand.vmem [shape: f32[2,128], index: 1, kind: input, shape index: {}]
  %s2 = inlined_call_operand.vmem [shape: f32[2,128], index: 2, kind: input, shape index: {}]
  %s3 = inlined_call_operand.hbm [shape: bf16[128,128], index: 3, kind: input, shape index: {}]
  %s4 = inlined_call_operand.vmem [shape: f32[1,128], index: 4, kind: input, shape index: {}]
  %s5 = inlined_call_operand.hbm [shape: bf16[128,128], index: 5, kind: input, shape index: {}]
  %s6 = inlined_call_operand.vmem [shape: f32[1,128], index: 6, kind: input, shape index: {}]
  %s7 = inlined_call_operand.hbm [shape: bf16[128,128], index: 7, kind: input, shape index: {}]
  %s8 = inlined_call_operand.vmem [shape: f32[1,128], index: 8, kind: input, shape index: {}]
  %s9 = inlined_call_operand.hbm [shape: bf16[8,128], index: 9, kind: output, shape index: {}]
  %s10 = sld [smem:[#allocation0]]
  $region58: #{tpu_custom_call.1} parent=0
    _
  %s12 = ssub.s32 1, %s10
  %s13 = scalar_select 0, %s12, %s10
  $region1: #{tpu_custom_call.1} parent=0
    #allocation2 [shape = 'u8[32768]{0}', space=vmem, size = 0x8000, scoped, tag = 'input window, operand 3, single buffered']
    #allocation3 [shape = 's32[1]{0}', space=sflag, size = 0x4, scoped, tag = 'scoped memory for tpu_custom_call.1']
    #allocation4 [shape = 's32[1]{0}', space=sflag, size = 0x4, scoped, tag = 'scoped memory for tpu_custom_call.1']
    #allocation5 [shape = 'u8[32768]{0}', space=vmem, size = 0x8000, scoped, tag = 'input window, operand 5, single buffered']
    #allocation6 [shape = 's32[1]{0}', space=sflag, size = 0x4, scoped, tag = 'scoped memory for tpu_custom_call.1']
    #allocation7 [shape = 'u8[32768]{0}', space=vmem, size = 0x8000, scoped, tag = 'input window, operand 7, single buffered']
    #allocation8 [shape = 'u8[2048]{0}', space=vmem, size = 0x800, scoped, tag = 'output window, operand 0, single buffered']
    %14 = vsyncpa [#allocation3], 0
    %15 = vsyncpa [#allocation6], 0
    %16 = vsyncpa [#allocation4], 0
    // Predicated region
    $region2: #{tpu_custom_call.1} parent=1 // pred_check
      _
    $region3: #{tpu_custom_call.1} parent=1 // pred_check_branch
      %18 = sbr.rel (0) target = $region5
    $region4: #{tpu_custom_call.1} parent=1 // pred_region
      _
    $region5: #{tpu_custom_call.1} parent=1 // pred_fallthru
      _
    // Predicated region
    $region6: #{tpu_custom_call.1} parent=1 // pred_check
      _
    $region7: #{tpu_custom_call.1} parent=1 // pred_check_branch
      %20 = sbr.rel (0) target = $region9
    $region8: #{tpu_custom_call.1} parent=1 // pred_region
      _
    $region9: #{tpu_custom_call.1} parent=1 // pred_fallthru
      _
    // Predicated region
    $region10: #{tpu_custom_call.1} parent=1 // pred_check
      _
    $region11: #{tpu_custom_call.1} parent=1 // pred_check_branch
      %22 = sbr.rel (0) target = $region13
    $region12: #{tpu_custom_call.1} parent=1 // pred_region
      _
    $region13: #{tpu_custom_call.1} parent=1 // pred_fallthru
      _
    // Predicated region
    $region14: #{tpu_custom_call.1} parent=1 // pred_check
      _
    $region15: #{tpu_custom_call.1} parent=1 // pred_check_branch
      %24 = sbr.rel (0) target = $region17
    $region16: #{tpu_custom_call.1} parent=1 // pred_region
      %s26 = ssub.s32 1024, 1024
      %27 = vsyncadd [#allocation3], %s26
      %s28 = sshll.u32 [#allocation2], 4
      %s29 = int_to_ptr.vmem [resolvable:$true] %s28
      %34 = dma.hbm_to_vmem [thread:$0]  %s3, 1024, %s29, [#allocation3], 64, 64, 4
    $region17: #{tpu_custom_call.1} parent=1 // pred_fallthru
      _
    // Predicated region
    $region18: #{tpu_custom_call.1} parent=1 // pred_check
      _
    $region19: #{tpu_custom_call.1} parent=1 // pred_check_branch
      %36 = sbr.rel (0) target = $region21
    $region20: #{tpu_custom_call.1} parent=1 // pred_region
      _
    $region21: #{tpu_custom_call.1} parent=1 // pred_fallthru
      _
    // Predicated region
    $region22: #{tpu_custom_call.1} parent=1 // pred_check
      _
    $region23: #{tpu_custom_call.1} parent=1 // pred_check_branch
      %38 = sbr.rel (0) target = $region25
    $region24: #{tpu_custom_call.1} parent=1 // pred_region
      %s40 = ssub.s32 1024, 1024
      %41 = vsyncadd [#allocation6], %s40
      %s42 = sshll.u32 [#allocation5], 4
      %s43 = int_to_ptr.vmem [resolvable:$true] %s42
      %48 = dma.hbm_to_vmem [thread:$0]  %s5, 1024, %s43, [#allocation6], 64, 64, 4
    $region25: #{tpu_custom_call.1} parent=1 // pred_fallthru
      _
    // Predicated region
    $region26: #{tpu_custom_call.1} parent=1 // pred_check
      _
    $region27: #{tpu_custom_call.1} parent=1 // pred_check_branch
      %50 = sbr.rel (0) target = $region29
    $region28: #{tpu_custom_call.1} parent=1 // pred_region
      _
    $region29: #{tpu_custom_call.1} parent=1 // pred_fallthru
      _
    // Predicated region
    $region30: #{tpu_custom_call.1} parent=1 // pred_check
      _
    $region31: #{tpu_custom_call.1} parent=1 // pred_check_branch
      %52 = sbr.rel (0) target = $region33
    $region32: #{tpu_custom_call.1} parent=1 // pred_region
      %s54 = ssub.s32 1024, 1024
      %55 = vsyncadd [#allocation6], %s54
      %s56 = sshll.u32 [#allocation7], 4
      %s57 = int_to_ptr.vmem [resolvable:$true] %s56
      %62 = dma.hbm_to_vmem [thread:$0]  %s7, 1024, %s57, [#allocation6], 64, 64, 4
    $region33: #{tpu_custom_call.1} parent=1 // pred_fallthru
      _
    // Predicated region
    $region34: #{tpu_custom_call.1} parent=1 // pred_check
      _
    $region35: #{tpu_custom_call.1} parent=1 // pred_check_branch
      %64 = sbr.rel (0) target = $region37
    $region36: #{tpu_custom_call.1} parent=1 // pred_region
      _
    $region37: #{tpu_custom_call.1} parent=1 // pred_fallthru
      _
    // Predicated region
    $region38: #{tpu_custom_call.1} parent=1 // pred_check
      _
    $region39: #{tpu_custom_call.1} parent=1 // pred_check_branch
      %66 = sbr.rel (0) target = $region41
    $region40: #{tpu_custom_call.1} parent=1 // pred_region
      %67 = dma.done [#allocation3], 1024
    $region41: #{tpu_custom_call.1} parent=1 // pred_fallthru
      _
    // Predicated region
    $region42: #{tpu_custom_call.1} parent=1 // pred_check
      _
    $region43: #{tpu_custom_call.1} parent=1 // pred_check_branch
      %69 = sbr.rel (0) target = $region45
    $region44: #{tpu_custom_call.1} parent=1 // pred_region
      %70 = dma.done [#allocation6], 1024
    $region45: #{tpu_custom_call.1} parent=1 // pred_fallthru
      _
    // Predicated region
    $region46: #{tpu_custom_call.1} parent=1 // pred_check
      _
    $region47: #{tpu_custom_call.1} parent=1 // pred_check_branch
      %72 = sbr.rel (0) target = $region49
    $region48: #{tpu_custom_call.1} parent=1 // pred_region
      %73 = dma.done [#allocation6], 1024
    $region49: #{tpu_custom_call.1} parent=1 // pred_fallthru
      _
    %v75 = vld [vmem:[%s0] sm:$0xff]
    %v76 = vmul.f32 %v75, %v75
    %78 = vrot.lane.b32.xlu0 %v76, 127
    %v79 = vpop.permute.xlu0 %78
    %v81 = vadd.f32 %v76, %v79
    %v82 = vmax.f32 %v81, 1e-16
    %v83 = vrsqrt.pop %v82
    %v84 = vmul.f32 %v75, %v83
    %86 = vrot.lane.b32.xlu0 %v83, 1
    %v87 = vpop.permute.xlu0 %86
    %v89 = vmul.f32 %v75, %v87
    %v90 = vld [vmem:[%s1] sm:$0x3]
    %92 = vset.pattern.permute.xlu0 0
    %93 = vperm.xlu0 %92, %v84
    %v94 = vpop.permute.xlu0 %93
    %v96 = vlaneseq
    %v97 = vshrl.u32 %v96, 7
    %v98 = vsub.s32 0, %v97
    %v99 = vrot.slane %v90, %v98
    %v100 = vmul.f32 %v94, %v99
    %102 = vset.pattern.permute.xlu0 1
    %103 = vperm.xlu0 %102, %v89
    %v104 = vpop.permute.xlu0 %103
    %v106 = vlaneseq
    %v107 = vshrl.u32 %v106, 7
    %v108 = vsub.s32 1, %v107
    %v109 = vrot.slane %v90, %v108
    %v110 = vmul.f32 %v104, %v109
    %v111 = vadd.f32 %v100, %v110
    %v112 = vld [vmem:[%s2] sm:$0x3]
    %114 = vset.pattern.permute.xlu0 0
    %115 = vperm.xlu0 %114, %v75
    %v116 = vpop.permute.xlu0 %115
    %v118 = vlaneseq
    %v119 = vshrl.u32 %v118, 7
    %v120 = vsub.s32 0, %v119
    %v121 = vrot.slane %v112, %v120
    %v122 = vmul.f32 %v116, %v121
    %123 = vset.pattern.permute.xlu0 1
    %124 = vperm.xlu0 %123, %v75
    %v125 = vpop.permute.xlu0 %124
    %v127 = vlaneseq
    %v128 = vshrl.u32 %v127, 7
    %v129 = vsub.s32 1, %v128
    %v130 = vrot.slane %v112, %v129
    %v131 = vmul.f32 %v125, %v130
    %v132 = vadd.f32 %v122, %v131
    %v133 = vpack.c.bf16 %v111, %v111
    %v134 = vld [vmem:[#allocation2] sm:$0xf]
    %v135 = vld [vmem:[#allocation2 + $0x4] sm:$0xf]
    %v136 = vld [vmem:[#allocation2 + $0x8] sm:$0xf]
    %v137 = vld [vmem:[#allocation2 + $0xc] sm:$0xf]
    %v138 = vld [vmem:[#allocation2 + $0x10] sm:$0xf]
    %v139 = vld [vmem:[#allocation2 + $0x14] sm:$0xf]
    %v140 = vld [vmem:[#allocation2 + $0x18] sm:$0xf]
    %v141 = vld [vmem:[#allocation2 + $0x1c] sm:$0xf]
    %v142 = vld [vmem:[#allocation2 + $0x20] sm:$0xf]
    %v143 = vld [vmem:[#allocation2 + $0x24] sm:$0xf]
    %v144 = vld [vmem:[#allocation2 + $0x28] sm:$0xf]
    %v145 = vld [vmem:[#allocation2 + $0x2c] sm:$0xf]
    %v146 = vld [vmem:[#allocation2 + $0x30] sm:$0xf]
    %v147 = vld [vmem:[#allocation2 + $0x34] sm:$0xf]
    %v148 = vld [vmem:[#allocation2 + $0x38] sm:$0xf]
    %v149 = vld [vmem:[#allocation2 + $0x3c] sm:$0xf]
    %v166 = vunpack.c.l.b16 %v134
    %v167 = vunpack.c.l.b16 %v135
    %v168 = vunpack.c.l.b16 %v136
    %v169 = vunpack.c.l.b16 %v137
    %v170 = vunpack.c.l.b16 %v138
    %v171 = vunpack.c.l.b16 %v139
    %v172 = vunpack.c.l.b16 %v140
    %v173 = vunpack.c.l.b16 %v141
    %v174 = vunpack.c.l.b16 %v142
    %v175 = vunpack.c.l.b16 %v143
    %v176 = vunpack.c.l.b16 %v144
    %v177 = vunpack.c.l.b16 %v145
    %v178 = vunpack.c.l.b16 %v146
    %v179 = vunpack.c.l.b16 %v147
    %v180 = vunpack.c.l.b16 %v148
    %v181 = vunpack.c.l.b16 %v149
    %v182 = vpack.c.b16 %v167, %v166
    %v183 = vpack.c.b16 %v169, %v168
    %v184 = vpack.c.b16 %v171, %v170
    %v185 = vpack.c.b16 %v173, %v172
    %v186 = vpack.c.b16 %v175, %v174
    %v187 = vpack.c.b16 %v177, %v176
    %v188 = vpack.c.b16 %v179, %v178
    %v189 = vpack.c.b16 %v181, %v180
    %198 = vmatprep.subr.bf16.mxu0 0
    %199 = vmatpush1.bf16.msra.mxu0 %v182
    %200 = vmatprep.subr.bf16.mxu0 0
    %201 = vmatpush1.bf16.msra.mxu0 %v183
    %202 = vmatprep.subr.bf16.mxu0 0
    %203 = vmatpush1.bf16.msra.mxu0 %v184
    %204 = vmatprep.subr.bf16.mxu0 0
    %205 = vmatpush1.bf16.msra.mxu0 %v185
    %206 = vmatprep.subr.bf16.mxu0 0
    %207 = vmatpush1.bf16.msra.mxu0 %v186
    %208 = vmatprep.subr.bf16.mxu0 0
    %209 = vmatpush1.bf16.msra.mxu0 %v187
    %210 = vmatprep.subr.bf16.mxu0 0
    %211 = vmatpush1.bf16.msra.mxu0 %v188
    %212 = vmatprep.subr.bf16.mxu0 0
    %213 = vmatpush1.bf16.msra.mxu0 %v189
    %214 = vmatprep.subr.bf16.mxu0 0
    %215 = vmatpush1.bf16.msra.mxu0 0
    %216 = vmatprep.subr.bf16.mxu0 0
    %217 = vmatpush1.bf16.msra.mxu0 0
    %218 = vmatprep.subr.bf16.mxu0 0
    %219 = vmatpush1.bf16.msra.mxu0 0
    %220 = vmatprep.subr.bf16.mxu0 0
    %221 = vmatpush1.bf16.msra.mxu0 0
    %222 = vmatprep.subr.bf16.mxu0 0
    %223 = vmatpush1.bf16.msra.mxu0 0
    %224 = vmatprep.subr.bf16.mxu0 0
    %225 = vmatpush1.bf16.msra.mxu0 0
    %226 = vmatprep.subr.bf16.mxu0 0
    %227 = vmatpush1.bf16.msra.mxu0 0
    %228 = vmatprep.subr.bf16.mxu0 0
    %229 = vmatpush1.bf16.msra.mxu0 0
    %230 = vmatprep.mubr.bf16.mxu0 0
    %231 = vmatmul.mubr.bf16.gmra.mrb[0].mxu0 %v133
    %v232 = vpop.f32.mrb[0].mxu0
    %v233 = vadd.f32 0.0, %v232
    %v234 = vpop.f32.mrb[0].mxu0
    %v235 = vpop.f32.mrb[0].mxu0
    %v236 = vpop.f32.mrb[0].mxu0
    %237 = vdwg.mxu0
    %v238 = vadd.f32 %v132, %v233
    %v239 = vld [vmem:[%s4] sm:$0x1]
    %v241 = vlaneseq
    %v242 = vshrl.u32 %v241, 7
    %v243 = vsub.s32 0, %v242
    %v244 = vrot.slane %v239, %v243
    %v246 = vadd.f32 %v238, %v244
    %v247 = vmax.f32 %v246, 0.0
    %v248 = vpack.c.bf16 %v247, %v247
    %v249 = vld [vmem:[#allocation5] sm:$0xf]
    %v250 = vld [vmem:[#allocation5 + $0x4] sm:$0xf]
    %v251 = vld [vmem:[#allocation5 + $0x8] sm:$0xf]
    %v252 = vld [vmem:[#allocation5 + $0xc] sm:$0xf]
    %v253 = vld [vmem:[#allocation5 + $0x10] sm:$0xf]
    %v254 = vld [vmem:[#allocation5 + $0x14] sm:$0xf]
    %v255 = vld [vmem:[#allocation5 + $0x18] sm:$0xf]
    %v256 = vld [vmem:[#allocation5 + $0x1c] sm:$0xf]
    %v257 = vld [vmem:[#allocation5 + $0x20] sm:$0xf]
    %v258 = vld [vmem:[#allocation5 + $0x24] sm:$0xf]
    %v259 = vld [vmem:[#allocation5 + $0x28] sm:$0xf]
    %v260 = vld [vmem:[#allocation5 + $0x2c] sm:$0xf]
    %v261 = vld [vmem:[#allocation5 + $0x30] sm:$0xf]
    %v262 = vld [vmem:[#allocation5 + $0x34] sm:$0xf]
    %v263 = vld [vmem:[#allocation5 + $0x38] sm:$0xf]
    %v264 = vld [vmem:[#allocation5 + $0x3c] sm:$0xf]
    %v265 = vld [vmem:[%s6] sm:$0x1]
    %v267 = vlaneseq
    %v268 = vshrl.u32 %v267, 7
    %v269 = vsub.s32 0, %v268
    %v270 = vrot.slane %v265, %v269
    %v288 = vunpack.c.l.b16 %v249
    %v289 = vunpack.c.l.b16 %v250
    %v290 = vunpack.c.l.b16 %v251
    %v291 = vunpack.c.l.b16 %v252
    %v292 = vunpack.c.l.b16 %v253
    %v293 = vunpack.c.l.b16 %v254
    %v294 = vunpack.c.l.b16 %v255
    %v295 = vunpack.c.l.b16 %v256
    %v296 = vunpack.c.l.b16 %v257
    %v297 = vunpack.c.l.b16 %v258
    %v298 = vunpack.c.l.b16 %v259
    %v299 = vunpack.c.l.b16 %v260
    %v300 = vunpack.c.l.b16 %v261
    %v301 = vunpack.c.l.b16 %v262
    %v302 = vunpack.c.l.b16 %v263
    %v303 = vunpack.c.l.b16 %v264
    %v304 = vpack.c.b16 %v289, %v288
    %v305 = vpack.c.b16 %v291, %v290
    %v306 = vpack.c.b16 %v293, %v292
    %v307 = vpack.c.b16 %v295, %v294
    %v308 = vpack.c.b16 %v297, %v296
    %v309 = vpack.c.b16 %v299, %v298
    %v310 = vpack.c.b16 %v301, %v300
    %v311 = vpack.c.b16 %v303, %v302
    %320 = vmatprep.subr.bf16.mxu0 0
    %321 = vmatpush1.bf16.msra.mxu0 %v304
    %322 = vmatprep.subr.bf16.mxu0 0
    %323 = vmatpush1.bf16.msra.mxu0 %v305
    %324 = vmatprep.subr.bf16.mxu0 0
    %325 = vmatpush1.bf16.msra.mxu0 %v306
    %326 = vmatprep.subr.bf16.mxu0 0
    %327 = vmatpush1.bf16.msra.mxu0 %v307
    %328 = vmatprep.subr.bf16.mxu0 0
    %329 = vmatpush1.bf16.msra.mxu0 %v308
    %330 = vmatprep.subr.bf16.mxu0 0
    %331 = vmatpush1.bf16.msra.mxu0 %v309
    %332 = vmatprep.subr.bf16.mxu0 0
    %333 = vmatpush1.bf16.msra.mxu0 %v310
    %334 = vmatprep.subr.bf16.mxu0 0
    %335 = vmatpush1.bf16.msra.mxu0 %v311
    %336 = vmatprep.subr.bf16.mxu0 0
    %337 = vmatpush1.bf16.msra.mxu0 0
    %338 = vmatprep.subr.bf16.mxu0 0
    %339 = vmatpush1.bf16.msra.mxu0 0
    %340 = vmatprep.subr.bf16.mxu0 0
    %341 = vmatpush1.bf16.msra.mxu0 0
    %342 = vmatprep.subr.bf16.mxu0 0
    %343 = vmatpush1.bf16.msra.mxu0 0
    %344 = vmatprep.subr.bf16.mxu0 0
    %345 = vmatpush1.bf16.msra.mxu0 0
    %346 = vmatprep.subr.bf16.mxu0 0
    %347 = vmatpush1.bf16.msra.mxu0 0
    %348 = vmatprep.subr.bf16.mxu0 0
    %349 = vmatpush1.bf16.msra.mxu0 0
    %350 = vmatprep.subr.bf16.mxu0 0
    %351 = vmatpush1.bf16.msra.mxu0 0
    %352 = vmatprep.mubr.bf16.mxu0 0
    %353 = vmatmul.mubr.bf16.gmra.mrb[0].mxu0 %v248
    %v354 = vpop.f32.mrb[0].mxu0
    %v355 = vadd.f32 %v270, %v354
    %v356 = vpop.f32.mrb[0].mxu0
    %v357 = vpop.f32.mrb[0].mxu0
    %v358 = vpop.f32.mrb[0].mxu0
    %359 = vdwg.mxu0
    %v360 = vmax.f32 %v355, 0.0
    %v361 = vpack.c.bf16 %v360, %v360
    %v362 = vld [vmem:[#allocation7] sm:$0xf]
    %v363 = vld [vmem:[#allocation7 + $0x4] sm:$0xf]
    %v364 = vld [vmem:[#allocation7 + $0x8] sm:$0xf]
    %v365 = vld [vmem:[#allocation7 + $0xc] sm:$0xf]
    %v366 = vld [vmem:[#allocation7 + $0x10] sm:$0xf]
    %v367 = vld [vmem:[#allocation7 + $0x14] sm:$0xf]
    %v368 = vld [vmem:[#allocation7 + $0x18] sm:$0xf]
    %v369 = vld [vmem:[#allocation7 + $0x1c] sm:$0xf]
    %v370 = vld [vmem:[#allocation7 + $0x20] sm:$0xf]
    %v371 = vld [vmem:[#allocation7 + $0x24] sm:$0xf]
    %v372 = vld [vmem:[#allocation7 + $0x28] sm:$0xf]
    %v373 = vld [vmem:[#allocation7 + $0x2c] sm:$0xf]
    %v374 = vld [vmem:[#allocation7 + $0x30] sm:$0xf]
    %v375 = vld [vmem:[#allocation7 + $0x34] sm:$0xf]
    %v376 = vld [vmem:[#allocation7 + $0x38] sm:$0xf]
    %v377 = vld [vmem:[#allocation7 + $0x3c] sm:$0xf]
    %v378 = vld [vmem:[%s8] sm:$0x1]
    %v380 = vlaneseq
    %v381 = vshrl.u32 %v380, 7
    %v382 = vsub.s32 0, %v381
    %v383 = vrot.slane %v378, %v382
    %v401 = vunpack.c.l.b16 %v362
    %v402 = vunpack.c.l.b16 %v363
    %v403 = vunpack.c.l.b16 %v364
    %v404 = vunpack.c.l.b16 %v365
    %v405 = vunpack.c.l.b16 %v366
    %v406 = vunpack.c.l.b16 %v367
    %v407 = vunpack.c.l.b16 %v368
    %v408 = vunpack.c.l.b16 %v369
    %v409 = vunpack.c.l.b16 %v370
    %v410 = vunpack.c.l.b16 %v371
    %v411 = vunpack.c.l.b16 %v372
    %v412 = vunpack.c.l.b16 %v373
    %v413 = vunpack.c.l.b16 %v374
    %v414 = vunpack.c.l.b16 %v375
    %v415 = vunpack.c.l.b16 %v376
    %v416 = vunpack.c.l.b16 %v377
    %v417 = vpack.c.b16 %v402, %v401
    %v418 = vpack.c.b16 %v404, %v403
    %v419 = vpack.c.b16 %v406, %v405
    %v420 = vpack.c.b16 %v408, %v407
    %v421 = vpack.c.b16 %v410, %v409
    %v422 = vpack.c.b16 %v412, %v411
    %v423 = vpack.c.b16 %v414, %v413
    %v424 = vpack.c.b16 %v416, %v415
    %433 = vmatprep.subr.bf16.mxu0 0
    %434 = vmatpush1.bf16.msra.mxu0 %v417
    %435 = vmatprep.subr.bf16.mxu0 0
    %436 = vmatpush1.bf16.msra.mxu0 %v418
    %437 = vmatprep.subr.bf16.mxu0 0
    %438 = vmatpush1.bf16.msra.mxu0 %v419
    %439 = vmatprep.subr.bf16.mxu0 0
    %440 = vmatpush1.bf16.msra.mxu0 %v420
    %441 = vmatprep.subr.bf16.mxu0 0
    %442 = vmatpush1.bf16.msra.mxu0 %v421
    %443 = vmatprep.subr.bf16.mxu0 0
    %444 = vmatpush1.bf16.msra.mxu0 %v422
    %445 = vmatprep.subr.bf16.mxu0 0
    %446 = vmatpush1.bf16.msra.mxu0 %v423
    %447 = vmatprep.subr.bf16.mxu0 0
    %448 = vmatpush1.bf16.msra.mxu0 %v424
    %449 = vmatprep.subr.bf16.mxu0 0
    %450 = vmatpush1.bf16.msra.mxu0 0
    %451 = vmatprep.subr.bf16.mxu0 0
    %452 = vmatpush1.bf16.msra.mxu0 0
    %453 = vmatprep.subr.bf16.mxu0 0
    %454 = vmatpush1.bf16.msra.mxu0 0
    %455 = vmatprep.subr.bf16.mxu0 0
    %456 = vmatpush1.bf16.msra.mxu0 0
    %457 = vmatprep.subr.bf16.mxu0 0
    %458 = vmatpush1.bf16.msra.mxu0 0
    %459 = vmatprep.subr.bf16.mxu0 0
    %460 = vmatpush1.bf16.msra.mxu0 0
    %461 = vmatprep.subr.bf16.mxu0 0
    %462 = vmatpush1.bf16.msra.mxu0 0
    %463 = vmatprep.subr.bf16.mxu0 0
    %464 = vmatpush1.bf16.msra.mxu0 0
    %465 = vmatprep.mubr.bf16.mxu0 0
    %466 = vmatmul.mubr.bf16.gmra.mrb[0].mxu0 %v361
    %v467 = vpop.f32.mrb[0].mxu0
    %v468 = vadd.f32 %v383, %v467
    %v469 = vpop.f32.mrb[0].mxu0
    %v470 = vpop.f32.mrb[0].mxu0
    %v471 = vpop.f32.mrb[0].mxu0
    %472 = vdwg.mxu0
    %v473 = vmul.f32 %v468, 0.5
    %v474 = vtanh.pop %v473
    %v475 = vmul.f32 %v474, 0.5
    %v476 = vadd.f32 %v475, 0.5
    %v477 = vpack.c.bf16 %v476, %v476
    %478 = vst [vmem:[#allocation8] sm:$0xf] %v477
    // Predicated region
    $region50: #{tpu_custom_call.1} parent=1 // pred_check
      _
    $region51: #{tpu_custom_call.1} parent=1 // pred_check_branch
      %480 = sbr.rel (0) target = $region53
    $region52: #{tpu_custom_call.1} parent=1 // pred_region
      %s482 = ssub.s32 64, 64
      %483 = vsyncadd [#allocation4], %s482
      %s485 = sshll.u32 [#allocation8], 4
      %s486 = int_to_ptr.vmem [resolvable:$true] %s485
      %488 = dma.vmem_to_hbm [thread:$0]  %s486, 64, %s9, [#allocation4]
    $region53: #{tpu_custom_call.1} parent=1 // pred_fallthru
      _
    // Predicated region
    $region54: #{tpu_custom_call.1} parent=1 // pred_check
      _
    $region55: #{tpu_custom_call.1} parent=1 // pred_check_branch
      %490 = sbr.rel (0) target = $region57
    $region56: #{tpu_custom_call.1} parent=1 // pred_region
      %491 = dma.done [#allocation4], 64
    $region57: #{tpu_custom_call.1} parent=1 // pred_fallthru
      _
    %492 = vsyncpa [#allocation3], 1
    %493 = vsyncpa [#allocation6], 1
    %494 = vsyncpa [#allocation4], 1

</llo_original>
